<compile_context>
chip_gen: v7x
topology: tpu7x:2x2x1
jax: 0.10.0
libtpu: 0.0.40
codegen_flags: <defaults>
</compile_context>

<pallas_src>
import functools
import math

import jax
import jax.numpy as jnp
from jax.experimental import pallas as pl
from jax.experimental.pallas import tpu as pltpu


def _cdiv(a: int, b: int) -> int:
    return -(-a // b)


def _mse_partial_kernel(pred_ref, tgt_ref, out_ref, *, rows_total, tile_rows,
                        blocks_per_split):
    """Accumulates per-lane partial sums of (pred - tgt)^2.

    pred_ref / tgt_ref : (TM, W) VMEM tiles of the lane-dense slab (f32/bf16).
    out_ref            : (1, W) f32 output block, resident across the row
                         (reduction) grid axis; one block per core split.
    """
    c = pl.program_id(0)          # core-split axis ("parallel")
    i = pl.program_id(1)          # row-block reduction axis ("arbitrary")

    @pl.when(i == 0)
    def _():
        out_ref[...] = jnp.zeros_like(out_ref)

    tm, w = pred_ref.shape
    # f32 compute regardless of input dtype (v5e VPU has no bf16 path).
    d = pred_ref[...].astype(jnp.float32) - tgt_ref[...].astype(jnp.float32)
    dd = d * d

    # Mask rows past the valid extent: covers the ragged final row-block and
    # the fully-duplicated (clamped) blocks of the second core split.  Pallas
    # does not zero-fill partial blocks, so this mask is required.
    gb = c * blocks_per_split + i                       # global row-block idx
    valid = rows_total - gb * tile_rows                 # may be <=0 or > tm
    row_ids = jax.lax.broadcasted_iota(jnp.int32, (tm, w), 0)
    dd = jnp.where(row_ids < valid, dd, 0.0)

    # Sublane reduce (XLU/VPU, free filler in a mem-bound kernel) into the
    # per-lane accumulator.
    out_ref[...] += jnp.sum(dd, axis=0, keepdims=True)


def mse_loss_pallas(pred: jax.Array, target: jax.Array, *,
                    target_block_bytes: int = 2 * 1024 * 1024) -> jax.Array:
    """MSELoss equivalent of AlpineBaseModule.loss_function (mean over all elems)."""
    assert pred.shape == target.shape, "output and signal must share a shape"
    n_elems = int(pred.size)

    # ---- glue: view as a lane-dense (rows, W) slab (free contiguous reshape).
    p = pred.reshape(-1)
    t = target.reshape(-1)
    n = p.shape[0]
    if n % 128 != 0:
        # TODO(synk): rare ragged fallback (element count not a lane multiple)
        # pays one zero-pad copy; zero diffs contribute nothing to the sum.
        pad = (-n) % 128
        p = jnp.pad(p, (0, pad))
        t = jnp.pad(t, (0, pad))
        n = p.shape[0]
    width = 128
    for cand in (1024, 512, 256):
        if n % cand == 0:
            width = cand
            break
    rows = n // width
    p2 = p.reshape(rows, width)
    t2 = t.reshape(rows, width)

    # ---- tiling: ~2 MiB f32 input blocks, sublane-aligned, budgeted so
    # 2 inputs x 2 pipeline buffers fit comfortably in every chip's scoped
    # VMEM (v5e 16 MiB ... v7x 32 MiB defaults).
    tile_rows = max(8, (target_block_bytes // (width * 4)) // 8 * 8)
    tile_rows = min(tile_rows, 4096)
    if rows < tile_rows:
        tile_rows = rows                     # full-extent block (always legal)
    nb = _cdiv(rows, tile_rows)              # total row blocks
    n_splits = 2 if nb >= 2 else 1           # v7x: one row range per TensorCore
    nbc = _cdiv(nb, n_splits)                # row blocks per core split

    kernel = functools.partial(
        _mse_partial_kernel,
        rows_total=rows, tile_rows=tile_rows, blocks_per_split=nbc)

    def row_block(c, i):
        # Clamp so the DMA window never starts past the array; the duplicated
        # block (only possible when nb is odd) is fully masked in-kernel.
        return (jnp.minimum(c * nbc + i, nb - 1), 0)

    partials = pl.pallas_call(
        kernel,
        out_shape=jax.ShapeDtypeStruct((n_splits, width), jnp.float32),
        grid_spec=pltpu.PrefetchScalarGridSpec(
            num_scalar_prefetch=0,
            grid=(n_splits, nbc),
            in_specs=[
                pl.BlockSpec((tile_rows, width), row_block),
                pl.BlockSpec((tile_rows, width), row_block),
            ],
            out_specs=pl.BlockSpec((1, width), lambda c, i: (c, 0)),
        ),
        compiler_params=pltpu.CompilerParams(
            dimension_semantics=("parallel", "arbitrary"),
            vmem_limit_bytes=32 * 1024 * 1024,
        ),
        cost_estimate=pl.CostEstimate(
            flops=3 * n_elems,
            transcendentals=0,
            bytes_accessed=2 * n_elems * pred.dtype.itemsize
            + 4 * n_splits * width),
    )(p2, t2)

    # Tiny final reduction (n_splits * width f32) + mean normalization using
    # the *unpadded* element count.
    return jnp.sum(partials) * (1.0 / n_elems)


class AlpineBaseModuleJAX:
    """JAX/Pallas mirror of AlpineBaseModule's state & concrete compute.

    `forward` stays abstract, exactly like the PyTorch base class.  The
    default loss function is the Pallas MSE kernel above.
    """

    def __init__(self):
        self.optimizer = None
        self.scheduler = None
        self.loss_function = lambda output_packet, signal: mse_loss_pallas(
            output_packet["output"], signal["signal"]
        )
        self.is_model_compiled = False
        self.best_weights = None
        self.best_loss = math.inf
        # Base class declares no parameters; nothing to initialize.

    def forward(self, *args, **kwargs):
        # Abstract in the reference module; INR subclasses supply the forward.
        raise NotImplementedError("Please implement the forward method in your subclass.")

    def forward_w_features(self, *args, **kwargs):
        raise NotImplementedError("Please implement the forward_w_features method in your subclass.")

    def compile(self, optimizer_name="adam", learning_rate=1e-4, scheduler=None):
        # TODO(synk): torch.optim.Adam/SGD setup is host-side training glue
        # with no Pallas equivalent; recorded as state only.
        self.optimizer = (optimizer_name, learning_rate)
        self.scheduler = scheduler
        self.is_model_compiled = True

    def register_loss_function(self, loss_function):
        self.loss_function = loss_function


if __name__ == "__main__":
    key = jax.random.PRNGKey(0)
    k1, k2, k3, k4 = jax.random.split(key, 4)

    # (B x * x D) convention: a pretend INR output and ground-truth signal,
    # batch=2, 256 coords, 3 channels.
    pred = jax.random.normal(k1, (2, 256, 3), dtype=jnp.float32)
    signal = jax.random.normal(k2, (2, 256, 3), dtype=jnp.float32)

    module = AlpineBaseModuleJAX()
    loss = module.loss_function({"output": pred}, {"signal": signal})
    loss = jax.block_until_ready(loss)
    ref = jnp.mean((pred - signal) ** 2)
    assert jnp.allclose(loss, ref, rtol=1e-5, atol=1e-6), (loss, ref)

    # Second small check: exercises the multi-block grid, the 2-way core
    # split, block-index clamping (odd block count) and ragged-row masking.
    p2 = jax.random.normal(k3, (2, 88, 128), dtype=jnp.float32)
    s2 = jax.random.normal(k4, (2, 88, 128), dtype=jnp.float32)
    loss2 = jax.block_until_ready(
        mse_loss_pallas(p2, s2, target_block_bytes=16 * 1024))
    ref2 = jnp.mean((p2 - s2) ** 2)
    assert jnp.allclose(loss2, ref2, rtol=1e-5, atol=1e-6), (loss2, ref2)

    print("KERNEL_OK")
</pallas_src>

<mosaic_0001>
module attributes {stable_mosaic.version = 11 : i64} {
  func.func @_mse_partial_kernel(%arg0: i32, %arg1: i32, %arg2: memref<3x512xf32, #tpu.memory_space<vmem>>, %arg3: memref<3x512xf32, #tpu.memory_space<vmem>>, %arg4: memref<1x512xf32, #tpu.memory_space<vmem>>) attributes {dimension_semantics = [#tpu.dimension_semantics<parallel>, #tpu.dimension_semantics<arbitrary>], iteration_bounds = array<i64: 1, 1>, scalar_prefetch = 0 : i64, scratch_operands = 0 : i64, tpu.core_type = #tpu.core_type<tc>, window_params = [{transform_indices = @transform_0, window_bounds = array<i64: 3, 512>}, {transform_indices = @transform_1, window_bounds = array<i64: 3, 512>}, {transform_indices = @transform_2, window_bounds = array<i64: 1, 512>}]} {
    %c0_i32 = arith.constant 0 : i32
    %0 = arith.cmpi eq, %arg1, %c0_i32 : i32
    %1 = arith.extui %0 : i1 to i32
    %c0_i32_0 = arith.constant 0 : i32
    %2 = arith.cmpi ne, %1, %c0_i32_0 : i32
    scf.if %2 {
      %cst_10 = arith.constant 0.000000e+00 : f32
      %21 = vector.broadcast %cst_10 : f32 to vector<1x512xf32>
      %c0_11 = arith.constant 0 : index
      %c0_12 = arith.constant 0 : index
      %22 = vector.load %arg4[%c0_11, %c0_12] : memref<1x512xf32, #tpu.memory_space<vmem>>, vector<1x512xf32>
      tpu.vector_store %arg4[%c0_11, %c0_12], %21 {strides = array<i32>} : memref<1x512xf32, #tpu.memory_space<vmem>>, vector<1x512xf32>,
    } else {
    }
    %c0 = arith.constant 0 : index
    %c0_1 = arith.constant 0 : index
    %3 = vector.load %arg2[%c0, %c0_1] : memref<3x512xf32, #tpu.memory_space<vmem>>, vector<3x512xf32>
    %c0_2 = arith.constant 0 : index
    %c0_3 = arith.constant 0 : index
    %4 = vector.load %arg3[%c0_2, %c0_3] : memref<3x512xf32, #tpu.memory_space<vmem>>, vector<3x512xf32>
    %5 = arith.subf %3, %4 : vector<3x512xf32>
    %6 = arith.mulf %5, %5 : vector<3x512xf32>
    %c1_i32 = arith.constant 1 : i32
    %7 = arith.muli %arg0, %c1_i32 : i32
    %8 = arith.addi %7, %arg1 : i32
    %c3_i32 = arith.constant 3 : i32
    %9 = arith.muli %8, %c3_i32 : i32
    %c3_i32_4 = arith.constant 3 : i32
    %10 = arith.subi %c3_i32_4, %9 : i32
    %11 = tpu.iota {dimensions = array<i32: 0>} : vector<3x512xi32>
    %12 = vector.broadcast %10 : i32 to vector<3x512xi32>
    %13 = arith.cmpi slt, %11, %12 : vector<3x512xi32>
    %cst = arith.constant 0.000000e+00 : f32
    %14 = vector.broadcast %cst : f32 to vector<3x512xf32>
    %15 = arith.select %13, %6, %14 : vector<3x512xi1>, vector<3x512xf32>
    %c0_5 = arith.constant 0 : index
    %c0_6 = arith.constant 0 : index
    %16 = vector.load %arg4[%c0_5, %c0_6] : memref<1x512xf32, #tpu.memory_space<vmem>>, vector<1x512xf32>
    %cst_7 = arith.constant dense<0.000000e+00> : vector<512xf32>
    %17 = vector.multi_reduction <add>, %15, %cst_7 [0] : vector<3x512xf32> to vector<512xf32>
    %18 = vector.shape_cast %17 : vector<512xf32> to vector<1x512xf32>
    %19 = arith.addf %16, %18 : vector<1x512xf32>
    %c0_8 = arith.constant 0 : index
    %c0_9 = arith.constant 0 : index
    %20 = vector.load %arg4[%c0_8, %c0_9] : memref<1x512xf32, #tpu.memory_space<vmem>>, vector<1x512xf32>
    tpu.vector_store %arg4[%c0_8, %c0_9], %19 {strides = array<i32>} : memref<1x512xf32, #tpu.memory_space<vmem>>, vector<1x512xf32>,
    return
  }
  func.func @transform_0(%arg0: i32, %arg1: i32) -> (i32, i32) {
    %c1_i32 = arith.constant 1 : i32
    %0 = arith.muli %arg0, %c1_i32 : i32
    %1 = arith.addi %0, %arg1 : i32
    %c0_i32 = arith.constant 0 : i32
    %2 = arith.minsi %1, %c0_i32 : i32
    %c0_i32_0 = arith.constant 0 : i32
    %c0_i32_1 = arith.constant 0 : i32
    return %2, %c0_i32_0 : i32, i32
  }
  func.func @transform_1(%arg0: i32, %arg1: i32) -> (i32, i32) {
    %c1_i32 = arith.constant 1 : i32
    %0 = arith.muli %arg0, %c1_i32 : i32
    %1 = arith.addi %0, %arg1 : i32
    %c0_i32 = arith.constant 0 : i32
    %2 = arith.minsi %1, %c0_i32 : i32
    %c0_i32_0 = arith.constant 0 : i32
    %c0_i32_1 = arith.constant 0 : i32
    return %2, %c0_i32_0 : i32, i32
  }
  func.func @transform_2(%arg0: i32, %arg1: i32) -> (i32, i32) {
    %c0_i32 = arith.constant 0 : i32
    %c0_i32_0 = arith.constant 0 : i32
    return %arg0, %c0_i32 : i32, i32
  }
}

</mosaic_0001>

<llo_original>
// kernel: tpu_custom_call.1
$region0: #{tpu_custom_call.1}
  #allocation0 [shape = 'u32[]', space=smem, size = 0x4, offset = 0x4, fixed_abs, tag = 'smem constant byte address 0x4 - core index']
  #allocation1 [shape = 'u32[144,128]{1,0:T(1,128)}', space=vmem, size = 0x12000, scoped, tag = 'internal scratch']
  %s0 = inlined_call_operand.hbm [shape: f32[3,512], index: 0, kind: input, shape index: {}]
  %s1 = inlined_call_operand.hbm [shape: f32[3,512], index: 1, kind: input, shape index: {}]
  %s2 = inlined_call_operand.hbm [shape: f32[1,512], index: 2, kind: output, shape index: {}]
  %s3 = sld [smem:[#allocation0]]
  $region30: #{tpu_custom_call.1} parent=0
    _
  %s5 = ssub.s32 1, %s3
  %s6 = scalar_select 0, %s5, %s3
  $region1: #{tpu_custom_call.1} parent=0
    #allocation2 [shape = 'u8[8192]{0}', space=vmem, size = 0x2000, scoped, tag = 'input window, operand 0, single buffered']
    #allocation3 [shape = 's32[1]{0}', space=sflag, size = 0x4, scoped, tag = 'scoped memory for tpu_custom_call.1']
    #allocation4 [shape = 's32[1]{0}', space=sflag, size = 0x4, scoped, tag = 'scoped memory for tpu_custom_call.1']
    #allocation5 [shape = 'u8[8192]{0}', space=vmem, size = 0x2000, scoped, tag = 'input window, operand 1, single buffered']
    #allocation6 [shape = 's32[1]{0}', space=sflag, size = 0x4, scoped, tag = 'scoped memory for tpu_custom_call.1']
    #allocation7 [shape = 'u8[2048]{0}', space=vmem, size = 0x800, scoped, tag = 'output window, operand 0, single buffered']
    %7 = vsyncpa [#allocation3], 0
    %8 = vsyncpa [#allocation6], 0
    %9 = vsyncpa [#allocation4], 0
    // Predicated region
    $region2: #{tpu_custom_call.1} parent=1 // pred_check
      _
    $region3: #{tpu_custom_call.1} parent=1 // pred_check_branch
      %11 = sbr.rel (0) target = $region5
    $region4: #{tpu_custom_call.1} parent=1 // pred_region
      %s12 = sadd.s32 0, 0
      %p13 = scmp.lt.s32.totalorder %s12, 0
      %s14 = scalar_select %p13, %s12, 0
      %s16 = ssub.s32 256, 256
      %17 = vsyncadd [#allocation3], %s16
      %s18 = smul.addr %s14, 4
      %s19 = smul.addr %s18, 64
      %s20 = scalar_lea.hbm %s0, %s19
      %s22 = sshll.u32 [#allocation2], 4
      %s23 = int_to_ptr.vmem [resolvable:$true] %s22
      %25 = dma.hbm_to_vmem [thread:$0]  %s20, 256, %s23, [#allocation3]
    $region5: #{tpu_custom_call.1} parent=1 // pred_fallthru
      _
    // Predicated region
    $region6: #{tpu_custom_call.1} parent=1 // pred_check
      _
    $region7: #{tpu_custom_call.1} parent=1 // pred_check_branch
      %27 = sbr.rel (0) target = $region9
    $region8: #{tpu_custom_call.1} parent=1 // pred_region
      %s28 = sadd.s32 0, 0
      %p29 = scmp.lt.s32.totalorder %s28, 0
      %s30 = scalar_select %p29, %s28, 0
      %s32 = ssub.s32 256, 256
      %33 = vsyncadd [#allocation6], %s32
      %s34 = smul.addr %s30, 4
      %s35 = smul.addr %s34, 64
      %s36 = scalar_lea.hbm %s1, %s35
      %s38 = sshll.u32 [#allocation5], 4
      %s39 = int_to_ptr.vmem [resolvable:$true] %s38
      %41 = dma.hbm_to_vmem [thread:$0]  %s36, 256, %s39, [#allocation6]
    $region9: #{tpu_custom_call.1} parent=1 // pred_fallthru
      _
    // Predicated region
    $region10: #{tpu_custom_call.1} parent=1 // pred_check
      _
    $region11: #{tpu_custom_call.1} parent=1 // pred_check_branch
      %43 = sbr.rel (0) target = $region13
    $region12: #{tpu_custom_call.1} parent=1 // pred_region
      %44 = dma.done [#allocation3], 256
    $region13: #{tpu_custom_call.1} parent=1 // pred_fallthru
      _
    // Predicated region
    $region14: #{tpu_custom_call.1} parent=1 // pred_check
      _
    $region15: #{tpu_custom_call.1} parent=1 // pred_check_branch
      %46 = sbr.rel (0) target = $region17
    $region16: #{tpu_custom_call.1} parent=1 // pred_region
      %47 = dma.done [#allocation6], 256
    $region17: #{tpu_custom_call.1} parent=1 // pred_fallthru
      _
    %s48 = sadd.s32 0, 0
    %p49 = scmp.lt.s32.totalorder %s48, 0
    %s50 = scalar_select %p49, %s48, 0
    %s51 = sadd.s32 0, 0
    %p52 = scmp.lt.s32.totalorder %s51, 0
    %s53 = scalar_select %p52, %s51, 0
    %p54 = scmp.eq.s32.totalorder 0, 0
    // Predicated region
    $region18: #{tpu_custom_call.1} parent=1 // pred_check
      %p55 = pneg %p54
    $region19: #{tpu_custom_call.1} parent=1 // pred_check_branch
      %57 = sbr.rel (%p55) target = $region21
    $region20: #{tpu_custom_call.1} parent=1 // pred_region
      %v58 = vlaneseq
      %vm59 = vcmp.ge.s32.totalorder %v58, 0
      %vm60 = vcmp.lt.s32.totalorder %v58, 512
      %vm61 = vmand %vm59, %vm60
      %62 = vst.msk [vmem:[#allocation7] sm:$0xf] %vm61, 0.0
    $region21: #{tpu_custom_call.1} parent=1 // pred_fallthru
      _
    %v63 = vld [vmem:[#allocation2] sm:$0x77]
    %v64 = vld [vmem:[#allocation2 + $0x8] sm:$0x77]
    %v65 = vld [vmem:[#allocation5] sm:$0x77]
    %v66 = vld [vmem:[#allocation5 + $0x8] sm:$0x77]
    %v67 = vsub.f32 %v63, %v65
    %v68 = vsub.f32 %v64, %v66
    %v69 = vmul.f32 %v67, %v67
    %v70 = vmul.f32 %v68, %v68
    %s71 = sadd.s32 0, 0
    %s72 = smul.u32 %s71, 3
    %s73 = ssub.s32 3, %s72
    %v74 = vlaneseq
    %v75 = vshrl.u32 %v74, 7
    %v76 = vstv %s73
    %vm77 = vcmp.lt.s32.totalorder %v75, %v76
    %v80 = vcombine.high %v69, %v69
    %v81 = vcombine.high %v70, %v70
    %v84 = vsel %vm77, %v69, 0.0
    %v85 = vsel %vm77, %v80, 0.0
    %v86 = vsel %vm77, %v70, 0.0
    %v87 = vsel %vm77, %v81, 0.0
    %v88 = vld [vmem:[#allocation7] sm:$0xf]
    %vm89 = vcmask 1042432
    %v90 = vsel %vm89, %v84, 0.0
    %v91 = vrot.slane %v90, 4
    %v92 = vadd.f32 %v90, %v91
    %v93 = vrot.slane %v92, 2
    %v94 = vadd.f32 %v92, %v93
    %v95 = vrot.slane %v94, 1
    %v96 = vadd.f32 %v94, %v95
    %v97 = vsel %vm89, %v85, 0.0
    %v98 = vrot.slane %v97, 4
    %v99 = vadd.f32 %v97, %v98
    %v100 = vrot.slane %v99, 2
    %v101 = vadd.f32 %v99, %v100
    %v102 = vrot.slane %v101, 1
    %v103 = vadd.f32 %v101, %v102
    %v104 = vsel %vm89, %v86, 0.0
    %v105 = vrot.slane %v104, 4
    %v106 = vadd.f32 %v104, %v105
    %v107 = vrot.slane %v106, 2
    %v108 = vadd.f32 %v106, %v107
    %v109 = vrot.slane %v108, 1
    %v110 = vadd.f32 %v108, %v109
    %v111 = vsel %vm89, %v87, 0.0
    %v112 = vrot.slane %v111, 4
    %v113 = vadd.f32 %v111, %v112
    %v114 = vrot.slane %v113, 2
    %v115 = vadd.f32 %v113, %v114
    %v116 = vrot.slane %v115, 1
    %v117 = vadd.f32 %v115, %v116
    %v122 = vcombine.low %v96, %v103
    %v123 = vcombine.low %v110, %v117
    %v125 = vunpack.c.l.s4 1966171168
    %v126 = vunpack.c.0.s8 %v125
    %v127 = vlaneseq
    %v128 = vshrl.u32 %v127, 7
    %v129 = vsub.s32 %v126, %v128
    %v130 = vrot.slane %v122, %v129
    %v132 = vunpack.c.l.s4 1966171168
    %v133 = vunpack.c.0.s8 %v132
    %v134 = vlaneseq
    %v135 = vshrl.u32 %v134, 7
    %v136 = vsub.s32 %v133, %v135
    %v137 = vrot.slane %v123, %v136
    %v138 = vcombine.low %v130, %v137
    %v140 = vunpack.c.l.s4 1966171168
    %v141 = vunpack.c.0.s8 %v140
    %v142 = vlaneseq
    %v143 = vshrl.u32 %v142, 7
    %v144 = vsub.s32 %v141, %v143
    %v145 = vrot.slane %v138, %v144
    %v147 = vadd.f32 %v88, %v145
    %v148 = vlaneseq
    %vm149 = vcmp.ge.s32.totalorder %v148, 0
    %vm150 = vcmp.lt.s32.totalorder %v148, 512
    %vm151 = vmand %vm149, %vm150
    %152 = vst.msk [vmem:[#allocation7] sm:$0xf] %vm151, %v147
    // Predicated region
    $region22: #{tpu_custom_call.1} parent=1 // pred_check
      _
    $region23: #{tpu_custom_call.1} parent=1 // pred_check_branch
      %154 = sbr.rel (0) target = $region25
    $region24: #{tpu_custom_call.1} parent=1 // pred_region
      %s156 = ssub.s32 64, 64
      %157 = vsyncadd [#allocation4], %s156
      %s159 = sshll.u32 [#allocation7], 4
      %s160 = int_to_ptr.vmem [resolvable:$true] %s159
      %162 = dma.vmem_to_hbm [thread:$0]  %s160, 64, %s2, [#allocation4]
    $region25: #{tpu_custom_call.1} parent=1 // pred_fallthru
      _
    // Predicated region
    $region26: #{tpu_custom_call.1} parent=1 // pred_check
      _
    $region27: #{tpu_custom_call.1} parent=1 // pred_check_branch
      %164 = sbr.rel (0) target = $region29
    $region28: #{tpu_custom_call.1} parent=1 // pred_region
      %165 = dma.done [#allocation4], 64
    $region29: #{tpu_custom_call.1} parent=1 // pred_fallthru
      _
    %166 = vsyncpa [#allocation3], 1
    %167 = vsyncpa [#allocation6], 1
    %168 = vsyncpa [#allocation4], 1

</llo_original>
